<compile_context>
chip_gen: v7x
topology: tpu7x:2x2x1
jax: 0.10.0
libtpu: 0.0.40
codegen_flags: <defaults>
</compile_context>

<pallas_src>
import jax
import jax.numpy as jnp
from jax.experimental import pallas as pl
from jax.experimental.pallas import tpu as pltpu


def _round_up(x, m):
    return (x + m - 1) // m * m


# ----------------------- kernel 1: logits + online LSE -----------------------

def _logits_lse_kernel(x_ref, w_ref, b_ref, logits_ref, lse_ref, m_scr, l_scr):
    """One (row_tile, vocab_tile) grid step.

    x: (tile_m, D) bf16, w: (D, tn) bf16, b: (1, tn) f32 (padded cols = -1e30).
    Writes the raw f32 logits tile and accumulates per-row running max /
    sum-exp across the vocab grid axis; on the last vocab tile writes
    lse = m + log(l) for the whole row.
    """
    n = pl.program_id(1)

    # bf16 operands, f32 accumulation on the MXU; bias add in f32.
    logits = jnp.dot(x_ref[...], w_ref[...], preferred_element_type=jnp.float32)
    logits = logits + b_ref[...]
    logits_ref[...] = logits

    @pl.when(n == 0)
    def _():
        m_scr[...] = jnp.full_like(m_scr, -jnp.inf)
        l_scr[...] = jnp.zeros_like(l_scr)

    tile_max = jnp.max(logits, axis=-1, keepdims=True)   # always finite
    m_prev = m_scr[...]
    m_new = jnp.maximum(m_prev, tile_max)
    l_scr[...] = (l_scr[...] * jnp.exp(m_prev - m_new)
                  + jnp.sum(jnp.exp(logits - m_new), axis=-1, keepdims=True))
    m_scr[...] = m_new

    @pl.when(n == pl.num_programs(1) - 1)
    def _():
        lse_ref[...] = m_scr[...] + jnp.log(l_scr[...])


# ------------------------ kernel 2: normalization epilogue -------------------

def _normalize_kernel(logits_ref, lse_ref, o_ref):
    o_ref[...] = (logits_ref[...] - lse_ref[...]).astype(o_ref.dtype)


# ------------------------------ parameter prep -------------------------------

def prepare_generator_params(weight, bias, *, tn_pref=1024):
    """One-time padding / casting of nn.Linear params (hoisted out of forward).

    weight: (vocab, d_model) like nn.Linear.weight; bias: (vocab,).
    Returns (w_pad bf16 (d_model, N_pad), b_pad f32 (1, N_pad), vocab, tn).
    Padded vocab columns carry w = 0 and b = -1e30 so they vanish from the
    log-sum-exp without any in-kernel masking.
    """
    V, D = weight.shape
    n128 = _round_up(V, 128)
    tn = min(tn_pref, n128)           # lane-dense vocab tile (multiple of 128/256)
    n_pad = _round_up(V, tn)

    w = weight.T.astype(jnp.bfloat16)                 # (D, V)
    b = bias.astype(jnp.float32)
    if n_pad != V:
        w = jnp.pad(w, ((0, 0), (0, n_pad - V)))
        b = jnp.pad(b, (0, n_pad - V), constant_values=jnp.float32(-1e30))
    return w, b.reshape(1, n_pad), V, tn


# --------------------------------- forward -----------------------------------

def generator_forward(x, w_pad, b_pad, vocab, tn):
    """log_softmax(x @ W^T + b, axis=-1) with pre-prepared padded params."""
    *lead, D = x.shape
    n_pad = w_pad.shape[1]
    grid_n = n_pad // tn

    M = 1
    for s in lead:
        M *= s

    # Balanced row tiles: target <= 256 rows/tile (multiple of 16 for bf16
    # sublane packing), sized so the last tile carries minimal padding waste.
    num_m = max(1, pl.cdiv(M, 256))
    tile_m = _round_up(pl.cdiv(M, num_m), 16)
    m_pad = tile_m * num_m

    x2 = x.reshape(M, D)
    if m_pad != M:
        x2 = jnp.pad(x2, ((0, m_pad - M), (0, 0)))
    x2 = x2.astype(jnp.bfloat16)

    vmem_limit = 48 * 1024 * 1024     # within v7x's 64 MiB physical VMEM

    logits, lse = pl.pallas_call(
        _logits_lse_kernel,
        out_shape=(jax.ShapeDtypeStruct((m_pad, n_pad), jnp.float32),
                   jax.ShapeDtypeStruct((m_pad, 1), jnp.float32)),
        grid=(num_m, grid_n),
        in_specs=[pl.BlockSpec((tile_m, D), lambda i, n: (i, 0)),
                  pl.BlockSpec((D, tn), lambda i, n: (0, n)),
                  pl.BlockSpec((1, tn), lambda i, n: (0, n))],
        out_specs=(pl.BlockSpec((tile_m, tn), lambda i, n: (i, n)),
                   pl.BlockSpec((tile_m, 1), lambda i, n: (i, 0))),
        scratch_shapes=[pltpu.VMEM((tile_m, 1), jnp.float32),
                        pltpu.VMEM((tile_m, 1), jnp.float32)],
        compiler_params=pltpu.CompilerParams(
            dimension_semantics=("parallel", "arbitrary"),
            vmem_limit_bytes=vmem_limit),
        cost_estimate=pl.CostEstimate(
            flops=2 * m_pad * D * n_pad,
            transcendentals=m_pad * n_pad,
            bytes_accessed=(m_pad * D * 2 + num_m * D * n_pad * 2
                            + n_pad * 4 + m_pad * n_pad * 4 + m_pad * 4)),
    )(x2, w_pad, b_pad)

    out = pl.pallas_call(
        _normalize_kernel,
        out_shape=jax.ShapeDtypeStruct((m_pad, n_pad), jnp.float32),
        grid=(num_m, grid_n),
        in_specs=[pl.BlockSpec((tile_m, tn), lambda i, n: (i, n)),
                  pl.BlockSpec((tile_m, 1), lambda i, n: (i, 0))],
        out_specs=pl.BlockSpec((tile_m, tn), lambda i, n: (i, n)),
        compiler_params=pltpu.CompilerParams(
            dimension_semantics=("parallel", "arbitrary"),
            vmem_limit_bytes=vmem_limit),
        cost_estimate=pl.CostEstimate(
            flops=m_pad * n_pad,
            transcendentals=0,
            bytes_accessed=2 * m_pad * n_pad * 4 + m_pad * 4),
    )(logits, lse)

    return out[:M, :vocab].reshape(*lead, vocab)


# ----------------------------------- main -------------------------------------

if __name__ == "__main__":
    d_model, vocab = 32, 16
    B, L = 2, 8

    key = jax.random.PRNGKey(0)
    kx, kw, kb = jax.random.split(key, 3)

    # Decoder hidden states fed into the Generator.
    x = jax.random.normal(kx, (B, L, d_model), jnp.float32)

    # nn.Linear(d_model, vocab): weight (vocab, d_model), bias (vocab,).
    weight = jax.random.normal(kw, (vocab, d_model), jnp.float32) * 0.05
    bias = jax.random.normal(kb, (vocab,), jnp.float32) * 0.05

    # One-time parameter preparation (pad + bf16 cast hoisted out of forward).
    w_pad, b_pad, V, tn = prepare_generator_params(weight, bias)

    out = generator_forward(x, w_pad, b_pad, V, tn)
    out = jax.block_until_ready(out)

    # Reference check against pure JAX (f32 reference; bf16 matmul operands
    # in the kernel -> loosen tolerance as anticipated in the review).
    ref = jax.nn.log_softmax(x @ weight.T + bias, axis=-1)
    assert out.shape == (B, L, vocab) and out.dtype == jnp.float32
    assert bool(jnp.all(jnp.isfinite(out)))
    err = float(jnp.max(jnp.abs(out - ref)))
    assert bool(jnp.allclose(out, ref, atol=2e-2, rtol=2e-2)), err
    print("KERNEL_OK")
</pallas_src>

<mosaic_0001>
module attributes {stable_mosaic.version = 11 : i64} {
  func.func @_logits_lse_kernel(%arg0: i32, %arg1: i32, %arg2: memref<16x32xbf16, #tpu.memory_space<vmem>>, %arg3: memref<32x128xbf16, #tpu.memory_space<vmem>>, %arg4: memref<1x128xf32, #tpu.memory_space<vmem>>, %arg5: memref<16x128xf32, #tpu.memory_space<vmem>>, %arg6: memref<16x1xf32, #tpu.memory_space<vmem>>, %arg7: memref<16x1xf32, #tpu.memory_space<vmem>>, %arg8: memref<16x1xf32, #tpu.memory_space<vmem>>) attributes {dimension_semantics = [#tpu.dimension_semantics<parallel>, #tpu.dimension_semantics<arbitrary>], iteration_bounds = array<i64: 1, 1>, scalar_prefetch = 0 : i64, scratch_operands = 2 : i64, tpu.core_type = #tpu.core_type<tc>, window_params = [{transform_indices = @transform_0, window_bounds = array<i64: 16, 32>}, {transform_indices = @transform_1, window_bounds = array<i64: 32, 128>}, {transform_indices = @transform_2, window_bounds = array<i64: 1, 128>}, {transform_indices = @transform_3, window_bounds = array<i64: 16, 128>}, {transform_indices = @transform_4, window_bounds = array<i64: 16, 1>}]} {
    %c0 = arith.constant 0 : index
    %c0_0 = arith.constant 0 : index
    %0 = vector.load %arg2[%c0, %c0_0] : memref<16x32xbf16, #tpu.memory_space<vmem>>, vector<16x32xbf16>
    %c0_1 = arith.constant 0 : index
    %c0_2 = arith.constant 0 : index
    %1 = vector.load %arg3[%c0_1, %c0_2] : memref<32x128xbf16, #tpu.memory_space<vmem>>, vector<32x128xbf16>
    %cst = arith.constant dense<0.000000e+00> : vector<16x128xf32>
    %2 = tpu.matmul %0, %1, %cst {dimension_numbers = #tpu.dot_dimension_numbers<[1], [0], [0], [1], [0, 0, 1, 1], [], []>} : vector<16x32xbf16>, vector<32x128xbf16>, vector<16x128xf32> -> vector<16x128xf32>
    %c0_3 = arith.constant 0 : index
    %c0_4 = arith.constant 0 : index
    %3 = vector.load %arg4[%c0_3, %c0_4] : memref<1x128xf32, #tpu.memory_space<vmem>>, vector<1x128xf32>
    %4 = vector.broadcast %3 : vector<1x128xf32> to vector<16x128xf32>
    %5 = arith.addf %2, %4 : vector<16x128xf32>
    %c0_5 = arith.constant 0 : index
    %c0_6 = arith.constant 0 : index
    %6 = vector.load %arg5[%c0_5, %c0_6] : memref<16x128xf32, #tpu.memory_space<vmem>>, vector<16x128xf32>
    tpu.vector_store %arg5[%c0_5, %c0_6], %5 {strides = array<i32>} : memref<16x128xf32, #tpu.memory_space<vmem>>, vector<16x128xf32>,
    %c0_i32 = arith.constant 0 : i32
    %7 = arith.cmpi eq, %arg1, %c0_i32 : i32
    %8 = arith.extui %7 : i1 to i32
    %c0_i32_7 = arith.constant 0 : i32
    %9 = arith.cmpi ne, %8, %c0_i32_7 : i32
    scf.if %9 {
      %cst_20 = arith.constant 0xFF800000 : f32
      %29 = vector.broadcast %cst_20 : f32 to vector<16x1xf32>
      %c0_21 = arith.constant 0 : index
      %c0_22 = arith.constant 0 : index
      %30 = vector.load %arg7[%c0_21, %c0_22] : memref<16x1xf32, #tpu.memory_space<vmem>>, vector<16x1xf32>
      tpu.vector_store %arg7[%c0_21, %c0_22], %29 {strides = array<i32>} : memref<16x1xf32, #tpu.memory_space<vmem>>, vector<16x1xf32>,
      %cst_23 = arith.constant 0.000000e+00 : f32
      %31 = vector.broadcast %cst_23 : f32 to vector<16x1xf32>
      %c0_24 = arith.constant 0 : index
      %c0_25 = arith.constant 0 : index
      %32 = vector.load %arg8[%c0_24, %c0_25] : memref<16x1xf32, #tpu.memory_space<vmem>>, vector<16x1xf32>
      tpu.vector_store %arg8[%c0_24, %c0_25], %31 {strides = array<i32>} : memref<16x1xf32, #tpu.memory_space<vmem>>, vector<16x1xf32>,
    } else {
    }
    %cst_8 = arith.constant dense<0xFF800000> : vector<16xf32>
    %10 = vector.multi_reduction <maximumf>, %5, %cst_8 [1] : vector<16x128xf32> to vector<16xf32>
    %11 = vector.shape_cast %10 : vector<16xf32> to vector<16x1xf32>
    %c0_9 = arith.constant 0 : index
    %c0_10 = arith.constant 0 : index
    %12 = vector.load %arg7[%c0_9, %c0_10] : memref<16x1xf32, #tpu.memory_space<vmem>>, vector<16x1xf32>
    %13 = arith.maximumf %12, %11 : vector<16x1xf32>
    %c0_11 = arith.constant 0 : index
    %c0_12 = arith.constant 0 : index
    %14 = vector.load %arg8[%c0_11, %c0_12] : memref<16x1xf32, #tpu.memory_space<vmem>>, vector<16x1xf32>
    %15 = arith.subf %12, %13 : vector<16x1xf32>
    %16 = math.exp %15 : vector<16x1xf32>
    %17 = arith.mulf %14, %16 : vector<16x1xf32>
    %18 = vector.broadcast %13 : vector<16x1xf32> to vector<16x128xf32>
    %19 = arith.subf %5, %18 : vector<16x128xf32>
    %20 = math.exp %19 : vector<16x128xf32>
    %cst_13 = arith.constant dense<0.000000e+00> : vector<16xf32>
    %21 = vector.multi_reduction <add>, %20, %cst_13 [1] : vector<16x128xf32> to vector<16xf32>
    %22 = vector.shape_cast %21 : vector<16xf32> to vector<16x1xf32>
    %23 = arith.addf %17, %22 : vector<16x1xf32>
    %c0_14 = arith.constant 0 : index
    %c0_15 = arith.constant 0 : index
    %24 = vector.load %arg8[%c0_14, %c0_15] : memref<16x1xf32, #tpu.memory_space<vmem>>, vector<16x1xf32>
    tpu.vector_store %arg8[%c0_14, %c0_15], %23 {strides = array<i32>} : memref<16x1xf32, #tpu.memory_space<vmem>>, vector<16x1xf32>,
    %c0_16 = arith.constant 0 : index
    %c0_17 = arith.constant 0 : index
    %25 = vector.load %arg7[%c0_16, %c0_17] : memref<16x1xf32, #tpu.memory_space<vmem>>, vector<16x1xf32>
    tpu.vector_store %arg7[%c0_16, %c0_17], %13 {strides = array<i32>} : memref<16x1xf32, #tpu.memory_space<vmem>>, vector<16x1xf32>,
    %c0_i32_18 = arith.constant 0 : i32
    %26 = arith.cmpi eq, %arg1, %c0_i32_18 : i32
    %27 = arith.extui %26 : i1 to i32
    %c0_i32_19 = arith.constant 0 : i32
    %28 = arith.cmpi ne, %27, %c0_i32_19 : i32
    scf.if %28 {
      %c0_20 = arith.constant 0 : index
      %c0_21 = arith.constant 0 : index
      %29 = vector.load %arg7[%c0_20, %c0_21] : memref<16x1xf32, #tpu.memory_space<vmem>>, vector<16x1xf32>
      %c0_22 = arith.constant 0 : index
      %c0_23 = arith.constant 0 : index
      %30 = vector.load %arg8[%c0_22, %c0_23] : memref<16x1xf32, #tpu.memory_space<vmem>>, vector<16x1xf32>
      %31 = math.log %30 : vector<16x1xf32>
      %32 = arith.addf %29, %31 : vector<16x1xf32>
      %c0_24 = arith.constant 0 : index
      %c0_25 = arith.constant 0 : index
      %33 = vector.load %arg6[%c0_24, %c0_25] : memref<16x1xf32, #tpu.memory_space<vmem>>, vector<16x1xf32>
      tpu.vector_store %arg6[%c0_24, %c0_25], %32 {strides = array<i32>} : memref<16x1xf32, #tpu.memory_space<vmem>>, vector<16x1xf32>,
    } else {
    }
    return
  }
  func.func @transform_0(%arg0: i32, %arg1: i32) -> (i32, i32) {
    %c0_i32 = arith.constant 0 : i32
    %c0_i32_0 = arith.constant 0 : i32
    return %arg0, %c0_i32 : i32, i32
  }
  func.func @transform_1(%arg0: i32, %arg1: i32) -> (i32, i32) {
    %c0_i32 = arith.constant 0 : i32
    %c0_i32_0 = arith.constant 0 : i32
    return %c0_i32, %arg1 : i32, i32
  }
  func.func @transform_2(%arg0: i32, %arg1: i32) -> (i32, i32) {
    %c0_i32 = arith.constant 0 : i32
    %c0_i32_0 = arith.constant 0 : i32
    return %c0_i32, %arg1 : i32, i32
  }
  func.func @transform_3(%arg0: i32, %arg1: i32) -> (i32, i32) {
    %c0_i32 = arith.constant 0 : i32
    return %arg0, %arg1 : i32, i32
  }
  func.func @transform_4(%arg0: i32, %arg1: i32) -> (i32, i32) {
    %c0_i32 = arith.constant 0 : i32
    %c0_i32_0 = arith.constant 0 : i32
    return %arg0, %c0_i32 : i32, i32
  }
}

</mosaic_0001>

<llo_original>
// kernel: tpu_custom_call.1
$region0: #{tpu_custom_call.1}
  #allocation0 [shape = 'u32[]', space=smem, size = 0x4, offset = 0x4, fixed_abs, tag = 'smem constant byte address 0x4 - core index']
  #allocation1 [shape = 'u32[144,128]{1,0:T(1,128)}', space=vmem, size = 0x12000, scoped, tag = 'internal scratch']
  #allocation2 [shape = 'f32[16,1]{1,0:T(8,128)}', space=vmem, size = 0x2000, scoped, tag = 'scratch operand']
  #allocation3 [shape = 'f32[16,1]{1,0:T(8,128)}', space=vmem, size = 0x2000, scoped, tag = 'scratch operand']
  %s0 = inlined_call_operand.hbm [shape: bf16[16,32], index: 0, kind: input, shape index: {}]
  %s1 = inlined_call_operand.hbm [shape: bf16[32,128], index: 1, kind: input, shape index: {}]
  %s2 = inlined_call_operand.vmem [shape: f32[1,128], index: 2, kind: input, shape index: {}]
  %s3 = inlined_call_operand.hbm [shape: f32[16,128], index: 3, kind: output, shape index: {0}]
  %s4 = inlined_call_operand.vmem [shape: f32[16,1], index: 4, kind: output, shape index: {1}]
  %5 = xla_tuple %s3, %s4
  %s6 = sld [smem:[#allocation0]]
  $region46: #{tpu_custom_call.1} parent=0
    _
  %s8 = ssub.s32 1, %s6
  %s9 = scalar_select 0, %s8, %s6
  $region1: #{tpu_custom_call.1} parent=0
    #allocation4 [shape = 'u8[4096]{0}', space=vmem, size = 0x1000, scoped, tag = 'input window, operand 0, single buffered']
    #allocation5 [shape = 's32[1]{0}', space=sflag, size = 0x4, scoped, tag = 'scoped memory for tpu_custom_call.1']
    #allocation6 [shape = 's32[1]{0}', space=sflag, size = 0x4, scoped, tag = 'scoped memory for tpu_custom_call.1']
    #allocation7 [shape = 'u8[8192]{0}', space=vmem, size = 0x2000, scoped, tag = 'input window, operand 1, single buffered']
    #allocation8 [shape = 's32[1]{0}', space=sflag, size = 0x4, scoped, tag = 'scoped memory for tpu_custom_call.1']
    #allocation9 [shape = 'u8[8192]{0}', space=vmem, size = 0x2000, scoped, tag = 'output window, operand 0, single buffered']
    %10 = vsyncpa [#allocation5], 0
    %11 = vsyncpa [#allocation8], 0
    %12 = vsyncpa [#allocation6], 0
    // Predicated region
    $region2: #{tpu_custom_call.1} parent=1 // pred_check
      _
    $region3: #{tpu_custom_call.1} parent=1 // pred_check_branch
      %14 = sbr.rel (0) target = $region5
    $region4: #{tpu_custom_call.1} parent=1 // pred_region
      %s16 = ssub.s32 128, 128
      %17 = vsyncadd [#allocation5], %s16
      %s18 = sshll.u32 [#allocation4], 4
      %s19 = int_to_ptr.vmem [resolvable:$true] %s18
      %24 = dma.hbm_to_vmem [thread:$0]  %s0, 128, %s19, [#allocation5], 64, 64, 4
    $region5: #{tpu_custom_call.1} parent=1 // pred_fallthru
      _
    // Predicated region
    $region6: #{tpu_custom_call.1} parent=1 // pred_check
      _
    $region7: #{tpu_custom_call.1} parent=1 // pred_check_branch
      %26 = sbr.rel (0) target = $region9
    $region8: #{tpu_custom_call.1} parent=1 // pred_region
      %s28 = ssub.s32 256, 256
      %29 = vsyncadd [#allocation8], %s28
      %s30 = sshll.u32 [#allocation7], 4
      %s31 = int_to_ptr.vmem [resolvable:$true] %s30
      %36 = dma.hbm_to_vmem [thread:$0]  %s1, 256, %s31, [#allocation8], 64, 64, 4
    $region9: #{tpu_custom_call.1} parent=1 // pred_fallthru
      _
    // Predicated region
    $region10: #{tpu_custom_call.1} parent=1 // pred_check
      _
    $region11: #{tpu_custom_call.1} parent=1 // pred_check_branch
      %38 = sbr.rel (0) target = $region13
    $region12: #{tpu_custom_call.1} parent=1 // pred_region
      _
    $region13: #{tpu_custom_call.1} parent=1 // pred_fallthru
      _
    // Predicated region
    $region14: #{tpu_custom_call.1} parent=1 // pred_check
      _
    $region15: #{tpu_custom_call.1} parent=1 // pred_check_branch
      %40 = sbr.rel (0) target = $region17
    $region16: #{tpu_custom_call.1} parent=1 // pred_region
      %41 = dma.done [#allocation5], 128
    $region17: #{tpu_custom_call.1} parent=1 // pred_fallthru
      _
    // Predicated region
    $region18: #{tpu_custom_call.1} parent=1 // pred_check
      _
    $region19: #{tpu_custom_call.1} parent=1 // pred_check_branch
      %43 = sbr.rel (0) target = $region21
    $region20: #{tpu_custom_call.1} parent=1 // pred_region
      %44 = dma.done [#allocation8], 256
    $region21: #{tpu_custom_call.1} parent=1 // pred_fallthru
      _
    %v46 = vld [vmem:[#allocation4] sm:$0xf]
    %v47 = vld [vmem:[#allocation4 + $0x4] sm:$0xf]
    %v48 = vld [vmem:[#allocation7] sm:$0xf]
    %v49 = vld [vmem:[#allocation7 + $0x4] sm:$0xf]
    %v50 = vld [vmem:[#allocation7 + $0x8] sm:$0xf]
    %v51 = vld [vmem:[#allocation7 + $0xc] sm:$0xf]
    %v52 = vld [vmem:[%s2] sm:$0x1]
    %v54 = vlaneseq
    %v55 = vshrl.u32 %v54, 7
    %v56 = vsub.s32 0, %v55
    %v57 = vrot.slane %v52, %v56
    %v61 = vunpack.c.l.b16 %v46
    %v62 = vunpack.c.l.b16 %v47
    %v63 = vpack.c.b16 %v62, %v61
    %v68 = vunpack.c.l.b16 %v48
    %v69 = vunpack.c.l.b16 %v49
    %v70 = vunpack.c.l.b16 %v50
    %v71 = vunpack.c.l.b16 %v51
    %v72 = vpack.c.b16 %v69, %v68
    %v73 = vpack.c.b16 %v71, %v70
    %vm76 = vcmask 261120
    %v78 = vsel %vm76, %v63, 0
    %80 = vmatprep.subr.bf16.mxu0 0
    %81 = vmatpush1.bf16.msra.mxu0 %v72
    %82 = vmatprep.subr.bf16.mxu0 0
    %83 = vmatpush1.bf16.msra.mxu0 %v73
    %84 = vmatprep.subr.bf16.mxu0 0
    %85 = vmatpush1.bf16.msra.mxu0 0
    %86 = vmatprep.subr.bf16.mxu0 0
    %87 = vmatpush1.bf16.msra.mxu0 0
    %88 = vmatprep.subr.bf16.mxu0 0
    %89 = vmatpush1.bf16.msra.mxu0 0
    %90 = vmatprep.subr.bf16.mxu0 0
    %91 = vmatpush1.bf16.msra.mxu0 0
    %92 = vmatprep.subr.bf16.mxu0 0
    %93 = vmatpush1.bf16.msra.mxu0 0
    %94 = vmatprep.subr.bf16.mxu0 0
    %95 = vmatpush1.bf16.msra.mxu0 0
    %96 = vmatprep.subr.bf16.mxu0 0
    %97 = vmatpush1.bf16.msra.mxu0 0
    %98 = vmatprep.subr.bf16.mxu0 0
    %99 = vmatpush1.bf16.msra.mxu0 0
    %100 = vmatprep.subr.bf16.mxu0 0
    %101 = vmatpush1.bf16.msra.mxu0 0
    %102 = vmatprep.subr.bf16.mxu0 0
    %103 = vmatpush1.bf16.msra.mxu0 0
    %104 = vmatprep.subr.bf16.mxu0 0
    %105 = vmatpush1.bf16.msra.mxu0 0
    %106 = vmatprep.subr.bf16.mxu0 0
    %107 = vmatpush1.bf16.msra.mxu0 0
    %108 = vmatprep.subr.bf16.mxu0 0
    %109 = vmatpush1.bf16.msra.mxu0 0
    %110 = vmatprep.subr.bf16.mxu0 0
    %111 = vmatpush1.bf16.msra.mxu0 0
    %112 = vmatprep.mubr.bf16.mxu0 0
    %113 = vmatmul.mubr.bf16.gmra.mrb[0].mxu0 %v78
    %v114 = vpop.f32.mrb[0].mxu0
    %v115 = vadd.f32 %v57, %v114
    %v116 = vpop.f32.mrb[0].mxu0
    %v117 = vpop.f32.mrb[0].mxu0
    %v118 = vadd.f32 %v57, %v117
    %v119 = vpop.f32.mrb[0].mxu0
    %120 = vdwg.mxu0
    %121 = vst [vmem:[#allocation9] sm:$0xff] %v115
    %122 = vst [vmem:[#allocation9 + $0x8] sm:$0xff] %v118
    %p123 = scmp.eq.s32.totalorder 0, 0
    // Predicated region
    $region22: #{tpu_custom_call.1} parent=1 // pred_check
      %p124 = pneg %p123
    $region23: #{tpu_custom_call.1} parent=1 // pred_check_branch
      %126 = sbr.rel (%p124) target = $region25
    $region24: #{tpu_custom_call.1} parent=1 // pred_region
      %vm127 = vcmask 7168
      %128 = vst.msk [vmem:[#allocation2] sm:$0xff] %vm127, -inf
      %129 = vst.msk [vmem:[#allocation2 + $0x8] sm:$0xff] %vm127, -inf
      %130 = vst.msk [vmem:[#allocation3] sm:$0xff] %vm127, 0.0
      %131 = vst.msk [vmem:[#allocation3 + $0x8] sm:$0xff] %vm127, 0.0
    $region25: #{tpu_custom_call.1} parent=1 // pred_fallthru
      _
    %132 = vmax.xlane.f32.xlu0 %v115
    %v133 = vpop.xlane.xlu0 %132
    %134 = vmax.xlane.f32.xlu0 %v118
    %v135 = vpop.xlane.xlu0 %134
    %v136 = vld [vmem:[#allocation2] sm:$0xff]
    %v137 = vld [vmem:[#allocation2 + $0x8] sm:$0xff]
    %v138 = vmax.f32 %v136, %v133
    %v139 = vmax.f32 %v137, %v135
    %v140 = vld [vmem:[#allocation3] sm:$0xff]
    %v141 = vld [vmem:[#allocation3 + $0x8] sm:$0xff]
    %v142 = vsub.f32 %v136, %v138
    %v143 = vsub.f32 %v137, %v139
    %v144 = vmul.f32 %v142, 1.442695
    %v145 = vpow.pop %v144
    %v146 = vmul.f32 %v143, 1.442695
    %v147 = vpow.pop %v146
    %v148 = vmul.f32 %v140, %v145
    %v149 = vmul.f32 %v141, %v147
    %151 = vset.pattern.permute.xlu0 0
    %152 = vperm.xlu0 %151, %v138
    %v153 = vpop.permute.xlu0 %152
    %156 = vset.pattern.permute.xlu0 0
    %157 = vperm.xlu0 %156, %v139
    %v158 = vpop.permute.xlu0 %157
    %v160 = vsub.f32 %v115, %v153
    %v161 = vsub.f32 %v118, %v158
    %v162 = vmul.f32 %v160, 1.442695
    %v163 = vpow.pop %v162
    %v164 = vmul.f32 %v161, 1.442695
    %v165 = vpow.pop %v164
    %166 = vadd.xlane.f32.xlu0 %v163
    %v167 = vpop.xlane.xlu0 %166
    %168 = vadd.xlane.f32.xlu0 %v165
    %v169 = vpop.xlane.xlu0 %168
    %v170 = vadd.f32 %v148, %v167
    %v171 = vadd.f32 %v149, %v169
    %vm172 = vcmask 7168
    %173 = vst.msk [vmem:[#allocation3] sm:$0xff] %vm172, %v170
    %174 = vst.msk [vmem:[#allocation3 + $0x8] sm:$0xff] %vm172, %v171
    %175 = vst.msk [vmem:[#allocation2] sm:$0xff] %vm172, %v138
    %176 = vst.msk [vmem:[#allocation2 + $0x8] sm:$0xff] %vm172, %v139
    // Predicated region
    $region26: #{tpu_custom_call.1} parent=1 // pred_check
      %p177 = pneg %p123
    $region27: #{tpu_custom_call.1} parent=1 // pred_check_branch
      %179 = sbr.rel (%p177) target = $region29
    $region28: #{tpu_custom_call.1} parent=1 // pred_region
      %v180 = vld [vmem:[#allocation2] sm:$0xff]
      %v181 = vld [vmem:[#allocation2 + $0x8] sm:$0xff]
      %v182 = vld [vmem:[#allocation3] sm:$0xff]
      %v183 = vld [vmem:[#allocation3 + $0x8] sm:$0xff]
      %v184 = vlog2.pop %v182
      %v185 = vmul.f32 %v184, 0.6931472
      %v186 = vlog2.pop %v183
      %v187 = vmul.f32 %v186, 0.6931472
      %v188 = vadd.f32 %v180, %v185
      %v189 = vadd.f32 %v181, %v187
      %190 = vst.msk [vmem:[%s4] sm:$0xff] %vm172, %v188
      %191 = vst.msk [vmem:[%s4 + $0x8] sm:$0xff] %vm172, %v189
    $region29: #{tpu_custom_call.1} parent=1 // pred_fallthru
      _
    // Predicated region
    $region30: #{tpu_custom_call.1} parent=1 // pred_check
      _
    $region31: #{tpu_custom_call.1} parent=1 // pred_check_branch
      %193 = sbr.rel (0) target = $region33
    $region32: #{tpu_custom_call.1} parent=1 // pred_region
      %s195 = ssub.s32 256, 256
      %196 = vsyncadd [#allocation6], %s195
      %s197 = sshll.u32 [#allocation9], 4
      %s198 = int_to_ptr.vmem [resolvable:$true] %s197
      %203 = dma.vmem_to_hbm [thread:$0]  %s198, 256, %s3, [#allocation6], 128, 128, 8
    $region33: #{tpu_custom_call.1} parent=1 // pred_fallthru
      _
    // Predicated region
    $region34: #{tpu_custom_call.1} parent=1 // pred_check
      _
    $region35: #{tpu_custom_call.1} parent=1 // pred_check_branch
      %205 = sbr.rel (0) target = $region37
    $region36: #{tpu_custom_call.1} parent=1 // pred_region
      _
    $region37: #{tpu_custom_call.1} parent=1 // pred_fallthru
      _
    // Predicated region
    $region38: #{tpu_custom_call.1} parent=1 // pred_check
      _
    $region39: #{tpu_custom_call.1} parent=1 // pred_check_branch
      %207 = sbr.rel (0) target = $region41
    $region40: #{tpu_custom_call.1} parent=1 // pred_region
      %208 = dma.done [#allocation6], 256
    $region41: #{tpu_custom_call.1} parent=1 // pred_fallthru
      _
    // Predicated region
    $region42: #{tpu_custom_call.1} parent=1 // pred_check
      _
    $region43: #{tpu_custom_call.1} parent=1 // pred_check_branch
      %210 = sbr.rel (0) target = $region45
    $region44: #{tpu_custom_call.1} parent=1 // pred_region
      _
    $region45: #{tpu_custom_call.1} parent=1 // pred_fallthru
      _
    %211 = vsyncpa [#allocation5], 1
    %212 = vsyncpa [#allocation8], 1
    %213 = vsyncpa [#allocation6], 1

</llo_original>
